<compile_context>
chip_gen: v7x
topology: tpu7x:2x2x1
jax: 0.10.0
libtpu: 0.0.40
codegen_flags: <defaults>
</compile_context>

<pallas_src>
import functools

import jax
import jax.numpy as jnp
from jax.experimental import pallas as pl
from jax.experimental.pallas import tpu as pltpu

NUM_LAYERS = 8


def mlp8_sum_kernel(x_ref, w_ref, out_ref):
    # Fold the batch reduction first: sum(X @ W1.T @ ... @ W8.T)
    #   == (1^T X) @ W1.T @ ... @ W8.T @ 1   (exact up to fp reordering).
    h = jnp.sum(x_ref[...], axis=0, keepdims=True)          # (1, D) f32
    h = h.astype(jnp.bfloat16)                               # single cast to bf16
    acc = None
    for i in range(NUM_LAYERS):                              # 8 dependent MXU matmuls
        acc = jnp.dot(h, w_ref[i], preferred_element_type=jnp.float32)  # (1, D) f32
        h = acc.astype(jnp.bfloat16)                         # tiny (1, D) re-cast
    out_ref[0, 0] = jnp.sum(acc)                             # final reduce in f32


def mlp8_sum(x, weights):
    """x: (B, D) f32; weights: list of 8 (D, D) torch-style Linear weights W.

    Returns scalar f32 = sum(fc8(...fc1(x)...)) with y = h @ W.T per layer.
    """
    # One stacked, pre-transposed, bf16 weight tensor: w_stacked[i] == W_i.T.
    w_stacked = jnp.stack(weights).transpose(0, 2, 1).astype(jnp.bfloat16)
    out = pl.pallas_call(
        mlp8_sum_kernel,
        out_shape=jax.ShapeDtypeStruct((1, 1), jnp.float32),
        in_specs=[
            pl.BlockSpec(memory_space=pltpu.MemorySpace.VMEM),  # x      (B, D)
            pl.BlockSpec(memory_space=pltpu.MemorySpace.VMEM),  # weights (8, D, D)
        ],
        out_specs=pl.BlockSpec(memory_space=pltpu.MemorySpace.SMEM),
    )(x, w_stacked)
    return out[0, 0]


if __name__ == "__main__":
    B, IOC = 8, 32  # small shapes consistent with Linear(ioc, ioc)
    key = jax.random.PRNGKey(0)
    kx, *kws = jax.random.split(key, 1 + NUM_LAYERS)

    x = jax.random.normal(kx, (B, IOC), dtype=jnp.float32)

    # Deterministic init matching torch.nn.Linear's U(-1/sqrt(in), 1/sqrt(in)) range.
    bound = 1.0 / jnp.sqrt(jnp.float32(IOC))
    weights = [
        jax.random.uniform(k, (IOC, IOC), dtype=jnp.float32,
                           minval=-bound, maxval=bound)
        for k in kws
    ]

    result = jax.jit(functools.partial(mlp8_sum))(x, weights)
    result = jax.block_until_ready(result)

    # Pure-JAX f32 reference check (kernel uses bf16 MXU inputs -> looser tol).
    h = x
    for w in weights:
        h = h @ w.T
    ref = jnp.sum(h)
    assert jnp.allclose(result, ref, rtol=5e-2, atol=5e-2), (result, ref)

    print("KERNEL_OK")
</pallas_src>

<mosaic_0001>
module attributes {stable_mosaic.version = 11 : i64} {
  func.func @mlp8_sum_kernel(%arg0: memref<8x32xf32, #tpu.memory_space<vmem>>, %arg1: memref<8x32x32xbf16, #tpu.memory_space<vmem>>, %arg2: memref<1x1xf32, #tpu.memory_space<smem>>) attributes {dimension_semantics = [], scalar_prefetch = 0 : i64, scratch_operands = 0 : i64, tpu.core_type = #tpu.core_type<tc>} {
    %c0 = arith.constant 0 : index
    %c0_0 = arith.constant 0 : index
    %0 = vector.load %arg0[%c0, %c0_0] : memref<8x32xf32, #tpu.memory_space<vmem>>, vector<8x32xf32>
    %cst = arith.constant dense<0.000000e+00> : vector<32xf32>
    %1 = vector.multi_reduction <add>, %0, %cst [0] : vector<8x32xf32> to vector<32xf32>
    %2 = vector.shape_cast %1 : vector<32xf32> to vector<1x32xf32>
    %3 = arith.truncf %2 : vector<1x32xf32> to vector<1x32xbf16>
    %c0_1 = arith.constant 0 : index
    %c0_2 = arith.constant 0 : index
    %c0_3 = arith.constant 0 : index
    %4 = vector.load %arg1[%c0_1, %c0_2, %c0_3] : memref<8x32x32xbf16, #tpu.memory_space<vmem>>, vector<1x32x32xbf16>
    %5 = vector.shape_cast %4 : vector<1x32x32xbf16> to vector<32x32xbf16>
    %cst_4 = arith.constant dense<0.000000e+00> : vector<1x32xf32>
    %6 = tpu.matmul %3, %5, %cst_4 {dimension_numbers = #tpu.dot_dimension_numbers<[1], [0], [0], [1], [0, 0, 1, 1], [], []>} : vector<1x32xbf16>, vector<32x32xbf16>, vector<1x32xf32> -> vector<1x32xf32>
    %7 = arith.truncf %6 : vector<1x32xf32> to vector<1x32xbf16>
    %c1 = arith.constant 1 : index
    %c0_5 = arith.constant 0 : index
    %c0_6 = arith.constant 0 : index
    %8 = vector.load %arg1[%c1, %c0_5, %c0_6] : memref<8x32x32xbf16, #tpu.memory_space<vmem>>, vector<1x32x32xbf16>
    %9 = vector.shape_cast %8 : vector<1x32x32xbf16> to vector<32x32xbf16>
    %cst_7 = arith.constant dense<0.000000e+00> : vector<1x32xf32>
    %10 = tpu.matmul %7, %9, %cst_7 {dimension_numbers = #tpu.dot_dimension_numbers<[1], [0], [0], [1], [0, 0, 1, 1], [], []>} : vector<1x32xbf16>, vector<32x32xbf16>, vector<1x32xf32> -> vector<1x32xf32>
    %11 = arith.truncf %10 : vector<1x32xf32> to vector<1x32xbf16>
    %c2 = arith.constant 2 : index
    %c0_8 = arith.constant 0 : index
    %c0_9 = arith.constant 0 : index
    %12 = vector.load %arg1[%c2, %c0_8, %c0_9] : memref<8x32x32xbf16, #tpu.memory_space<vmem>>, vector<1x32x32xbf16>
    %13 = vector.shape_cast %12 : vector<1x32x32xbf16> to vector<32x32xbf16>
    %cst_10 = arith.constant dense<0.000000e+00> : vector<1x32xf32>
    %14 = tpu.matmul %11, %13, %cst_10 {dimension_numbers = #tpu.dot_dimension_numbers<[1], [0], [0], [1], [0, 0, 1, 1], [], []>} : vector<1x32xbf16>, vector<32x32xbf16>, vector<1x32xf32> -> vector<1x32xf32>
    %15 = arith.truncf %14 : vector<1x32xf32> to vector<1x32xbf16>
    %c3 = arith.constant 3 : index
    %c0_11 = arith.constant 0 : index
    %c0_12 = arith.constant 0 : index
    %16 = vector.load %arg1[%c3, %c0_11, %c0_12] : memref<8x32x32xbf16, #tpu.memory_space<vmem>>, vector<1x32x32xbf16>
    %17 = vector.shape_cast %16 : vector<1x32x32xbf16> to vector<32x32xbf16>
    %cst_13 = arith.constant dense<0.000000e+00> : vector<1x32xf32>
    %18 = tpu.matmul %15, %17, %cst_13 {dimension_numbers = #tpu.dot_dimension_numbers<[1], [0], [0], [1], [0, 0, 1, 1], [], []>} : vector<1x32xbf16>, vector<32x32xbf16>, vector<1x32xf32> -> vector<1x32xf32>
    %19 = arith.truncf %18 : vector<1x32xf32> to vector<1x32xbf16>
    %c4 = arith.constant 4 : index
    %c0_14 = arith.constant 0 : index
    %c0_15 = arith.constant 0 : index
    %20 = vector.load %arg1[%c4, %c0_14, %c0_15] : memref<8x32x32xbf16, #tpu.memory_space<vmem>>, vector<1x32x32xbf16>
    %21 = vector.shape_cast %20 : vector<1x32x32xbf16> to vector<32x32xbf16>
    %cst_16 = arith.constant dense<0.000000e+00> : vector<1x32xf32>
    %22 = tpu.matmul %19, %21, %cst_16 {dimension_numbers = #tpu.dot_dimension_numbers<[1], [0], [0], [1], [0, 0, 1, 1], [], []>} : vector<1x32xbf16>, vector<32x32xbf16>, vector<1x32xf32> -> vector<1x32xf32>
    %23 = arith.truncf %22 : vector<1x32xf32> to vector<1x32xbf16>
    %c5 = arith.constant 5 : index
    %c0_17 = arith.constant 0 : index
    %c0_18 = arith.constant 0 : index
    %24 = vector.load %arg1[%c5, %c0_17, %c0_18] : memref<8x32x32xbf16, #tpu.memory_space<vmem>>, vector<1x32x32xbf16>
    %25 = vector.shape_cast %24 : vector<1x32x32xbf16> to vector<32x32xbf16>
    %cst_19 = arith.constant dense<0.000000e+00> : vector<1x32xf32>
    %26 = tpu.matmul %23, %25, %cst_19 {dimension_numbers = #tpu.dot_dimension_numbers<[1], [0], [0], [1], [0, 0, 1, 1], [], []>} : vector<1x32xbf16>, vector<32x32xbf16>, vector<1x32xf32> -> vector<1x32xf32>
    %27 = arith.truncf %26 : vector<1x32xf32> to vector<1x32xbf16>
    %c6 = arith.constant 6 : index
    %c0_20 = arith.constant 0 : index
    %c0_21 = arith.constant 0 : index
    %28 = vector.load %arg1[%c6, %c0_20, %c0_21] : memref<8x32x32xbf16, #tpu.memory_space<vmem>>, vector<1x32x32xbf16>
    %29 = vector.shape_cast %28 : vector<1x32x32xbf16> to vector<32x32xbf16>
    %cst_22 = arith.constant dense<0.000000e+00> : vector<1x32xf32>
    %30 = tpu.matmul %27, %29, %cst_22 {dimension_numbers = #tpu.dot_dimension_numbers<[1], [0], [0], [1], [0, 0, 1, 1], [], []>} : vector<1x32xbf16>, vector<32x32xbf16>, vector<1x32xf32> -> vector<1x32xf32>
    %31 = arith.truncf %30 : vector<1x32xf32> to vector<1x32xbf16>
    %c7 = arith.constant 7 : index
    %c0_23 = arith.constant 0 : index
    %c0_24 = arith.constant 0 : index
    %32 = vector.load %arg1[%c7, %c0_23, %c0_24] : memref<8x32x32xbf16, #tpu.memory_space<vmem>>, vector<1x32x32xbf16>
    %33 = vector.shape_cast %32 : vector<1x32x32xbf16> to vector<32x32xbf16>
    %cst_25 = arith.constant dense<0.000000e+00> : vector<1x32xf32>
    %34 = tpu.matmul %31, %33, %cst_25 {dimension_numbers = #tpu.dot_dimension_numbers<[1], [0], [0], [1], [0, 0, 1, 1], [], []>} : vector<1x32xbf16>, vector<32x32xbf16>, vector<1x32xf32> -> vector<1x32xf32>
    %35 = vector.shape_cast %34 : vector<1x32xf32> to vector<1x1x32xf32>
    %cst_26 = arith.constant dense<0.000000e+00> : vector<1xf32>
    %36 = vector.multi_reduction <add>, %35, %cst_26 [1, 2] : vector<1x1x32xf32> to vector<1xf32>
    %37 = vector.shape_cast %36 : vector<1xf32> to vector<1x1x1xf32>
    %38 = vector.extract %37[0, 0, 0] : f32 from vector<1x1x1xf32>
    %c0_27 = arith.constant 0 : index
    %c0_28 = arith.constant 0 : index
    %39 = memref.load %arg2[%c0_27, %c0_28] : memref<1x1xf32, #tpu.memory_space<smem>>
    memref.store %38, %arg2[%c0_27, %c0_28] : memref<1x1xf32, #tpu.memory_space<smem>>
    return
  }
}

</mosaic_0001>

<llo_original>
// kernel: mlp8_sum.1
$region0: #{mlp8_sum.1}
  #allocation0 [shape = 'u32[]', space=smem, size = 0x4, offset = 0x4, fixed_abs, tag = 'smem constant byte address 0x4 - core index']
  #allocation1 [shape = 'u32[144,128]{1,0:T(1,128)}', space=vmem, size = 0x12000, scoped, tag = 'internal scratch']
  %s0 = inlined_call_operand.vmem [shape: f32[8,32], index: 0, kind: input, shape index: {}]
  %s1 = inlined_call_operand.vmem [shape: bf16[8,32,32], index: 1, kind: input, shape index: {}]
  %s2 = inlined_call_operand.hbm [shape: f32[1,1], index: 2, kind: output, shape index: {}]
  %s3 = sld [smem:[#allocation0]]
  $region18: #{mlp8_sum.1} parent=0
    _
  %s5 = ssub.s32 1, %s3
  %s6 = scalar_select 0, %s5, %s3
  $region1: #{mlp8_sum.1} parent=0
    #allocation2 [shape = 'u8[512]{0}', space=smem, size = 0x200, scoped, tag = 'output window, operand 0, single buffered']
    #allocation3 [shape = 's32[1]{0}', space=sflag, size = 0x4, scoped, tag = 'scoped memory for mlp8_sum.1']
    %7 = vsyncpa [#allocation3], 0
    // Predicated region
    $region2: #{mlp8_sum.1} parent=1 // pred_check
      _
    $region3: #{mlp8_sum.1} parent=1 // pred_check_branch
      %9 = sbr.rel (0) target = $region5
    $region4: #{mlp8_sum.1} parent=1 // pred_region
      _
    $region5: #{mlp8_sum.1} parent=1 // pred_fallthru
      _
    // Predicated region
    $region6: #{mlp8_sum.1} parent=1 // pred_check
      _
    $region7: #{mlp8_sum.1} parent=1 // pred_check_branch
      %11 = sbr.rel (0) target = $region9
    $region8: #{mlp8_sum.1} parent=1 // pred_region
      _
    $region9: #{mlp8_sum.1} parent=1 // pred_fallthru
      _
    %v13 = vld [vmem:[%s0] sm:$0xff]
    %vm14 = vcmask 261120
    %v15 = vsel %vm14, %v13, 0.0
    %v16 = vrot.slane %v15, 4
    %v17 = vadd.f32 %v15, %v16
    %v18 = vrot.slane %v17, 2
    %v19 = vadd.f32 %v17, %v18
    %v20 = vrot.slane %v19, 1
    %v21 = vadd.f32 %v19, %v20
    %v22 = vpack.c.bf16 %v21, %v21
    %v23 = vld [vmem:[%s1] sm:$0xf]
    %v24 = vld [vmem:[%s1 + $0x4] sm:$0xf]
    %v25 = vld [vmem:[%s1 + $0x8] sm:$0xf]
    %v26 = vld [vmem:[%s1 + $0xc] sm:$0xf]
    %v31 = vunpack.c.l.b16 %v23
    %v32 = vunpack.c.l.b16 %v24
    %v33 = vunpack.c.l.b16 %v25
    %v34 = vunpack.c.l.b16 %v26
    %v35 = vpack.c.b16 %v32, %v31
    %v36 = vpack.c.b16 %v34, %v33
    %v40 = vsel %vm14, %v22, 0
    %42 = vmatprep.subr.bf16.mxu0 0
    %43 = vmatpush1.bf16.msra.mxu0 %v35
    %44 = vmatprep.subr.bf16.mxu0 0
    %45 = vmatpush1.bf16.msra.mxu0 %v36
    %46 = vmatprep.subr.bf16.mxu0 0
    %47 = vmatpush1.bf16.msra.mxu0 0
    %48 = vmatprep.subr.bf16.mxu0 0
    %49 = vmatpush1.bf16.msra.mxu0 0
    %50 = vmatprep.subr.bf16.mxu0 0
    %51 = vmatpush1.bf16.msra.mxu0 0
    %52 = vmatprep.subr.bf16.mxu0 0
    %53 = vmatpush1.bf16.msra.mxu0 0
    %54 = vmatprep.subr.bf16.mxu0 0
    %55 = vmatpush1.bf16.msra.mxu0 0
    %56 = vmatprep.subr.bf16.mxu0 0
    %57 = vmatpush1.bf16.msra.mxu0 0
    %58 = vmatprep.subr.bf16.mxu0 0
    %59 = vmatpush1.bf16.msra.mxu0 0
    %60 = vmatprep.subr.bf16.mxu0 0
    %61 = vmatpush1.bf16.msra.mxu0 0
    %62 = vmatprep.subr.bf16.mxu0 0
    %63 = vmatpush1.bf16.msra.mxu0 0
    %64 = vmatprep.subr.bf16.mxu0 0
    %65 = vmatpush1.bf16.msra.mxu0 0
    %66 = vmatprep.subr.bf16.mxu0 0
    %67 = vmatpush1.bf16.msra.mxu0 0
    %68 = vmatprep.subr.bf16.mxu0 0
    %69 = vmatpush1.bf16.msra.mxu0 0
    %70 = vmatprep.subr.bf16.mxu0 0
    %71 = vmatpush1.bf16.msra.mxu0 0
    %72 = vmatprep.subr.bf16.mxu0 0
    %73 = vmatpush1.bf16.msra.mxu0 0
    %74 = vmatprep.mubr.bf16.mxu0 0
    %75 = vmatmul.mubr.bf16.gmra.mrb[0].mxu0 %v40
    %v76 = vpop.f32.mrb[0].mxu0
    %v77 = vadd.f32 0.0, %v76
    %v78 = vpop.f32.mrb[0].mxu0
    %v79 = vpop.f32.mrb[0].mxu0
    %v80 = vpop.f32.mrb[0].mxu0
    %81 = vdwg.mxu0
    %v82 = vpack.c.bf16 %v77, %v77
    %s83 = scalar_lea.vmem %s1, 16
    %v84 = vld [vmem:[%s83] sm:$0xf]
    %v85 = vld [vmem:[%s83 + $0x4] sm:$0xf]
    %v86 = vld [vmem:[%s83 + $0x8] sm:$0xf]
    %v87 = vld [vmem:[%s83 + $0xc] sm:$0xf]
    %v92 = vunpack.c.l.b16 %v84
    %v93 = vunpack.c.l.b16 %v85
    %v94 = vunpack.c.l.b16 %v86
    %v95 = vunpack.c.l.b16 %v87
    %v96 = vpack.c.b16 %v93, %v92
    %v97 = vpack.c.b16 %v95, %v94
    %v101 = vsel %vm14, %v82, 0
    %103 = vmatprep.subr.bf16.mxu0 0
    %104 = vmatpush1.bf16.msra.mxu0 %v96
    %105 = vmatprep.subr.bf16.mxu0 0
    %106 = vmatpush1.bf16.msra.mxu0 %v97
    %107 = vmatprep.subr.bf16.mxu0 0
    %108 = vmatpush1.bf16.msra.mxu0 0
    %109 = vmatprep.subr.bf16.mxu0 0
    %110 = vmatpush1.bf16.msra.mxu0 0
    %111 = vmatprep.subr.bf16.mxu0 0
    %112 = vmatpush1.bf16.msra.mxu0 0
    %113 = vmatprep.subr.bf16.mxu0 0
    %114 = vmatpush1.bf16.msra.mxu0 0
    %115 = vmatprep.subr.bf16.mxu0 0
    %116 = vmatpush1.bf16.msra.mxu0 0
    %117 = vmatprep.subr.bf16.mxu0 0
    %118 = vmatpush1.bf16.msra.mxu0 0
    %119 = vmatprep.subr.bf16.mxu0 0
    %120 = vmatpush1.bf16.msra.mxu0 0
    %121 = vmatprep.subr.bf16.mxu0 0
    %122 = vmatpush1.bf16.msra.mxu0 0
    %123 = vmatprep.subr.bf16.mxu0 0
    %124 = vmatpush1.bf16.msra.mxu0 0
    %125 = vmatprep.subr.bf16.mxu0 0
    %126 = vmatpush1.bf16.msra.mxu0 0
    %127 = vmatprep.subr.bf16.mxu0 0
    %128 = vmatpush1.bf16.msra.mxu0 0
    %129 = vmatprep.subr.bf16.mxu0 0
    %130 = vmatpush1.bf16.msra.mxu0 0
    %131 = vmatprep.subr.bf16.mxu0 0
    %132 = vmatpush1.bf16.msra.mxu0 0
    %133 = vmatprep.subr.bf16.mxu0 0
    %134 = vmatpush1.bf16.msra.mxu0 0
    %135 = vmatprep.mubr.bf16.mxu0 0
    %136 = vmatmul.mubr.bf16.gmra.mrb[0].mxu0 %v101
    %v137 = vpop.f32.mrb[0].mxu0
    %v138 = vadd.f32 0.0, %v137
    %v139 = vpop.f32.mrb[0].mxu0
    %v140 = vpop.f32.mrb[0].mxu0
    %v141 = vpop.f32.mrb[0].mxu0
    %142 = vdwg.mxu0
    %v143 = vpack.c.bf16 %v138, %v138
    %s144 = scalar_lea.vmem %s1, 32
    %v145 = vld [vmem:[%s144] sm:$0xf]
    %v146 = vld [vmem:[%s144 + $0x4] sm:$0xf]
    %v147 = vld [vmem:[%s144 + $0x8] sm:$0xf]
    %v148 = vld [vmem:[%s144 + $0xc] sm:$0xf]
    %v153 = vunpack.c.l.b16 %v145
    %v154 = vunpack.c.l.b16 %v146
    %v155 = vunpack.c.l.b16 %v147
    %v156 = vunpack.c.l.b16 %v148
    %v157 = vpack.c.b16 %v154, %v153
    %v158 = vpack.c.b16 %v156, %v155
    %v162 = vsel %vm14, %v143, 0
    %164 = vmatprep.subr.bf16.mxu0 0
    %165 = vmatpush1.bf16.msra.mxu0 %v157
    %166 = vmatprep.subr.bf16.mxu0 0
    %167 = vmatpush1.bf16.msra.mxu0 %v158
    %168 = vmatprep.subr.bf16.mxu0 0
    %169 = vmatpush1.bf16.msra.mxu0 0
    %170 = vmatprep.subr.bf16.mxu0 0
    %171 = vmatpush1.bf16.msra.mxu0 0
    %172 = vmatprep.subr.bf16.mxu0 0
    %173 = vmatpush1.bf16.msra.mxu0 0
    %174 = vmatprep.subr.bf16.mxu0 0
    %175 = vmatpush1.bf16.msra.mxu0 0
    %176 = vmatprep.subr.bf16.mxu0 0
    %177 = vmatpush1.bf16.msra.mxu0 0
    %178 = vmatprep.subr.bf16.mxu0 0
    %179 = vmatpush1.bf16.msra.mxu0 0
    %180 = vmatprep.subr.bf16.mxu0 0
    %181 = vmatpush1.bf16.msra.mxu0 0
    %182 = vmatprep.subr.bf16.mxu0 0
    %183 = vmatpush1.bf16.msra.mxu0 0
    %184 = vmatprep.subr.bf16.mxu0 0
    %185 = vmatpush1.bf16.msra.mxu0 0
    %186 = vmatprep.subr.bf16.mxu0 0
    %187 = vmatpush1.bf16.msra.mxu0 0
    %188 = vmatprep.subr.bf16.mxu0 0
    %189 = vmatpush1.bf16.msra.mxu0 0
    %190 = vmatprep.subr.bf16.mxu0 0
    %191 = vmatpush1.bf16.msra.mxu0 0
    %192 = vmatprep.subr.bf16.mxu0 0
    %193 = vmatpush1.bf16.msra.mxu0 0
    %194 = vmatprep.subr.bf16.mxu0 0
    %195 = vmatpush1.bf16.msra.mxu0 0
    %196 = vmatprep.mubr.bf16.mxu0 0
    %197 = vmatmul.mubr.bf16.gmra.mrb[0].mxu0 %v162
    %v198 = vpop.f32.mrb[0].mxu0
    %v199 = vadd.f32 0.0, %v198
    %v200 = vpop.f32.mrb[0].mxu0
    %v201 = vpop.f32.mrb[0].mxu0
    %v202 = vpop.f32.mrb[0].mxu0
    %203 = vdwg.mxu0
    %v204 = vpack.c.bf16 %v199, %v199
    %s205 = scalar_lea.vmem %s1, 48
    %v206 = vld [vmem:[%s205] sm:$0xf]
    %v207 = vld [vmem:[%s205 + $0x4] sm:$0xf]
    %v208 = vld [vmem:[%s205 + $0x8] sm:$0xf]
    %v209 = vld [vmem:[%s205 + $0xc] sm:$0xf]
    %v214 = vunpack.c.l.b16 %v206
    %v215 = vunpack.c.l.b16 %v207
    %v216 = vunpack.c.l.b16 %v208
    %v217 = vunpack.c.l.b16 %v209
    %v218 = vpack.c.b16 %v215, %v214
    %v219 = vpack.c.b16 %v217, %v216
    %v223 = vsel %vm14, %v204, 0
    %225 = vmatprep.subr.bf16.mxu0 0
    %226 = vmatpush1.bf16.msra.mxu0 %v218
    %227 = vmatprep.subr.bf16.mxu0 0
    %228 = vmatpush1.bf16.msra.mxu0 %v219
    %229 = vmatprep.subr.bf16.mxu0 0
    %230 = vmatpush1.bf16.msra.mxu0 0
    %231 = vmatprep.subr.bf16.mxu0 0
    %232 = vmatpush1.bf16.msra.mxu0 0
    %233 = vmatprep.subr.bf16.mxu0 0
    %234 = vmatpush1.bf16.msra.mxu0 0
    %235 = vmatprep.subr.bf16.mxu0 0
    %236 = vmatpush1.bf16.msra.mxu0 0
    %237 = vmatprep.subr.bf16.mxu0 0
    %238 = vmatpush1.bf16.msra.mxu0 0
    %239 = vmatprep.subr.bf16.mxu0 0
    %240 = vmatpush1.bf16.msra.mxu0 0
    %241 = vmatprep.subr.bf16.mxu0 0
    %242 = vmatpush1.bf16.msra.mxu0 0
    %243 = vmatprep.subr.bf16.mxu0 0
    %244 = vmatpush1.bf16.msra.mxu0 0
    %245 = vmatprep.subr.bf16.mxu0 0
    %246 = vmatpush1.bf16.msra.mxu0 0
    %247 = vmatprep.subr.bf16.mxu0 0
    %248 = vmatpush1.bf16.msra.mxu0 0
    %249 = vmatprep.subr.bf16.mxu0 0
    %250 = vmatpush1.bf16.msra.mxu0 0
    %251 = vmatprep.subr.bf16.mxu0 0
    %252 = vmatpush1.bf16.msra.mxu0 0
    %253 = vmatprep.subr.bf16.mxu0 0
    %254 = vmatpush1.bf16.msra.mxu0 0
    %255 = vmatprep.subr.bf16.mxu0 0
    %256 = vmatpush1.bf16.msra.mxu0 0
    %257 = vmatprep.mubr.bf16.mxu0 0
    %258 = vmatmul.mubr.bf16.gmra.mrb[0].mxu0 %v223
    %v259 = vpop.f32.mrb[0].mxu0
    %v260 = vadd.f32 0.0, %v259
    %v261 = vpop.f32.mrb[0].mxu0
    %v262 = vpop.f32.mrb[0].mxu0
    %v263 = vpop.f32.mrb[0].mxu0
    %264 = vdwg.mxu0
    %v265 = vpack.c.bf16 %v260, %v260
    %s266 = scalar_lea.vmem %s1, 64
    %v267 = vld [vmem:[%s266] sm:$0xf]
    %v268 = vld [vmem:[%s266 + $0x4] sm:$0xf]
    %v269 = vld [vmem:[%s266 + $0x8] sm:$0xf]
    %v270 = vld [vmem:[%s266 + $0xc] sm:$0xf]
    %v275 = vunpack.c.l.b16 %v267
    %v276 = vunpack.c.l.b16 %v268
    %v277 = vunpack.c.l.b16 %v269
    %v278 = vunpack.c.l.b16 %v270
    %v279 = vpack.c.b16 %v276, %v275
    %v280 = vpack.c.b16 %v278, %v277
    %v284 = vsel %vm14, %v265, 0
    %286 = vmatprep.subr.bf16.mxu0 0
    %287 = vmatpush1.bf16.msra.mxu0 %v279
    %288 = vmatprep.subr.bf16.mxu0 0
    %289 = vmatpush1.bf16.msra.mxu0 %v280
    %290 = vmatprep.subr.bf16.mxu0 0
    %291 = vmatpush1.bf16.msra.mxu0 0
    %292 = vmatprep.subr.bf16.mxu0 0
    %293 = vmatpush1.bf16.msra.mxu0 0
    %294 = vmatprep.subr.bf16.mxu0 0
    %295 = vmatpush1.bf16.msra.mxu0 0
    %296 = vmatprep.subr.bf16.mxu0 0
    %297 = vmatpush1.bf16.msra.mxu0 0
    %298 = vmatprep.subr.bf16.mxu0 0
    %299 = vmatpush1.bf16.msra.mxu0 0
    %300 = vmatprep.subr.bf16.mxu0 0
    %301 = vmatpush1.bf16.msra.mxu0 0
    %302 = vmatprep.subr.bf16.mxu0 0
    %303 = vmatpush1.bf16.msra.mxu0 0
    %304 = vmatprep.subr.bf16.mxu0 0
    %305 = vmatpush1.bf16.msra.mxu0 0
    %306 = vmatprep.subr.bf16.mxu0 0
    %307 = vmatpush1.bf16.msra.mxu0 0
    %308 = vmatprep.subr.bf16.mxu0 0
    %309 = vmatpush1.bf16.msra.mxu0 0
    %310 = vmatprep.subr.bf16.mxu0 0
    %311 = vmatpush1.bf16.msra.mxu0 0
    %312 = vmatprep.subr.bf16.mxu0 0
    %313 = vmatpush1.bf16.msra.mxu0 0
    %314 = vmatprep.subr.bf16.mxu0 0
    %315 = vmatpush1.bf16.msra.mxu0 0
    %316 = vmatprep.subr.bf16.mxu0 0
    %317 = vmatpush1.bf16.msra.mxu0 0
    %318 = vmatprep.mubr.bf16.mxu0 0
    %319 = vmatmul.mubr.bf16.gmra.mrb[0].mxu0 %v284
    %v320 = vpop.f32.mrb[0].mxu0
    %v321 = vadd.f32 0.0, %v320
    %v322 = vpop.f32.mrb[0].mxu0
    %v323 = vpop.f32.mrb[0].mxu0
    %v324 = vpop.f32.mrb[0].mxu0
    %325 = vdwg.mxu0
    %v326 = vpack.c.bf16 %v321, %v321
    %s327 = scalar_lea.vmem %s1, 80
    %v328 = vld [vmem:[%s327] sm:$0xf]
    %v329 = vld [vmem:[%s327 + $0x4] sm:$0xf]
    %v330 = vld [vmem:[%s327 + $0x8] sm:$0xf]
    %v331 = vld [vmem:[%s327 + $0xc] sm:$0xf]
    %v336 = vunpack.c.l.b16 %v328
    %v337 = vunpack.c.l.b16 %v329
    %v338 = vunpack.c.l.b16 %v330
    %v339 = vunpack.c.l.b16 %v331
    %v340 = vpack.c.b16 %v337, %v336
    %v341 = vpack.c.b16 %v339, %v338
    %v345 = vsel %vm14, %v326, 0
    %347 = vmatprep.subr.bf16.mxu0 0
    %348 = vmatpush1.bf16.msra.mxu0 %v340
    %349 = vmatprep.subr.bf16.mxu0 0
    %350 = vmatpush1.bf16.msra.mxu0 %v341
    %351 = vmatprep.subr.bf16.mxu0 0
    %352 = vmatpush1.bf16.msra.mxu0 0
    %353 = vmatprep.subr.bf16.mxu0 0
    %354 = vmatpush1.bf16.msra.mxu0 0
    %355 = vmatprep.subr.bf16.mxu0 0
    %356 = vmatpush1.bf16.msra.mxu0 0
    %357 = vmatprep.subr.bf16.mxu0 0
    %358 = vmatpush1.bf16.msra.mxu0 0
    %359 = vmatprep.subr.bf16.mxu0 0
    %360 = vmatpush1.bf16.msra.mxu0 0
    %361 = vmatprep.subr.bf16.mxu0 0
    %362 = vmatpush1.bf16.msra.mxu0 0
    %363 = vmatprep.subr.bf16.mxu0 0
    %364 = vmatpush1.bf16.msra.mxu0 0
    %365 = vmatprep.subr.bf16.mxu0 0
    %366 = vmatpush1.bf16.msra.mxu0 0
    %367 = vmatprep.subr.bf16.mxu0 0
    %368 = vmatpush1.bf16.msra.mxu0 0
    %369 = vmatprep.subr.bf16.mxu0 0
    %370 = vmatpush1.bf16.msra.mxu0 0
    %371 = vmatprep.subr.bf16.mxu0 0
    %372 = vmatpush1.bf16.msra.mxu0 0
    %373 = vmatprep.subr.bf16.mxu0 0
    %374 = vmatpush1.bf16.msra.mxu0 0
    %375 = vmatprep.subr.bf16.mxu0 0
    %376 = vmatpush1.bf16.msra.mxu0 0
    %377 = vmatprep.subr.bf16.mxu0 0
    %378 = vmatpush1.bf16.msra.mxu0 0
    %379 = vmatprep.mubr.bf16.mxu0 0
    %380 = vmatmul.mubr.bf16.gmra.mrb[0].mxu0 %v345
    %v381 = vpop.f32.mrb[0].mxu0
    %v382 = vadd.f32 0.0, %v381
    %v383 = vpop.f32.mrb[0].mxu0
    %v384 = vpop.f32.mrb[0].mxu0
    %v385 = vpop.f32.mrb[0].mxu0
    %386 = vdwg.mxu0
    %v387 = vpack.c.bf16 %v382, %v382
    %s388 = scalar_lea.vmem %s1, 96
    %v389 = vld [vmem:[%s388] sm:$0xf]
    %v390 = vld [vmem:[%s388 + $0x4] sm:$0xf]
    %v391 = vld [vmem:[%s388 + $0x8] sm:$0xf]
    %v392 = vld [vmem:[%s388 + $0xc] sm:$0xf]
    %v397 = vunpack.c.l.b16 %v389
    %v398 = vunpack.c.l.b16 %v390
    %v399 = vunpack.c.l.b16 %v391
    %v400 = vunpack.c.l.b16 %v392
    %v401 = vpack.c.b16 %v398, %v397
    %v402 = vpack.c.b16 %v400, %v399
    %v406 = vsel %vm14, %v387, 0
    %408 = vmatprep.subr.bf16.mxu0 0
    %409 = vmatpush1.bf16.msra.mxu0 %v401
    %410 = vmatprep.subr.bf16.mxu0 0
    %411 = vmatpush1.bf16.msra.mxu0 %v402
    %412 = vmatprep.subr.bf16.mxu0 0
    %413 = vmatpush1.bf16.msra.mxu0 0
    %414 = vmatprep.subr.bf16.mxu0 0
    %415 = vmatpush1.bf16.msra.mxu0 0
    %416 = vmatprep.subr.bf16.mxu0 0
    %417 = vmatpush1.bf16.msra.mxu0 0
    %418 = vmatprep.subr.bf16.mxu0 0
    %419 = vmatpush1.bf16.msra.mxu0 0
    %420 = vmatprep.subr.bf16.mxu0 0
    %421 = vmatpush1.bf16.msra.mxu0 0
    %422 = vmatprep.subr.bf16.mxu0 0
    %423 = vmatpush1.bf16.msra.mxu0 0
    %424 = vmatprep.subr.bf16.mxu0 0
    %425 = vmatpush1.bf16.msra.mxu0 0
    %426 = vmatprep.subr.bf16.mxu0 0
    %427 = vmatpush1.bf16.msra.mxu0 0
    %428 = vmatprep.subr.bf16.mxu0 0
    %429 = vmatpush1.bf16.msra.mxu0 0
    %430 = vmatprep.subr.bf16.mxu0 0
    %431 = vmatpush1.bf16.msra.mxu0 0
    %432 = vmatprep.subr.bf16.mxu0 0
    %433 = vmatpush1.bf16.msra.mxu0 0
    %434 = vmatprep.subr.bf16.mxu0 0
    %435 = vmatpush1.bf16.msra.mxu0 0
    %436 = vmatprep.subr.bf16.mxu0 0
    %437 = vmatpush1.bf16.msra.mxu0 0
    %438 = vmatprep.subr.bf16.mxu0 0
    %439 = vmatpush1.bf16.msra.mxu0 0
    %440 = vmatprep.mubr.bf16.mxu0 0
    %441 = vmatmul.mubr.bf16.gmra.mrb[0].mxu0 %v406
    %v442 = vpop.f32.mrb[0].mxu0
    %v443 = vadd.f32 0.0, %v442
    %v444 = vpop.f32.mrb[0].mxu0
    %v445 = vpop.f32.mrb[0].mxu0
    %v446 = vpop.f32.mrb[0].mxu0
    %447 = vdwg.mxu0
    %v448 = vpack.c.bf16 %v443, %v443
    %s449 = scalar_lea.vmem %s1, 112
    %v450 = vld [vmem:[%s449] sm:$0xf]
    %v451 = vld [vmem:[%s449 + $0x4] sm:$0xf]
    %v452 = vld [vmem:[%s449 + $0x8] sm:$0xf]
    %v453 = vld [vmem:[%s449 + $0xc] sm:$0xf]
    %v458 = vunpack.c.l.b16 %v450
    %v459 = vunpack.c.l.b16 %v451
    %v460 = vunpack.c.l.b16 %v452
    %v461 = vunpack.c.l.b16 %v453
    %v462 = vpack.c.b16 %v459, %v458
    %v463 = vpack.c.b16 %v461, %v460
    %v467 = vsel %vm14, %v448, 0
    %469 = vmatprep.subr.bf16.mxu0 0
    %470 = vmatpush1.bf16.msra.mxu0 %v462
    %471 = vmatprep.subr.bf16.mxu0 0
    %472 = vmatpush1.bf16.msra.mxu0 %v463
    %473 = vmatprep.subr.bf16.mxu0 0
    %474 = vmatpush1.bf16.msra.mxu0 0
    %475 = vmatprep.subr.bf16.mxu0 0
    %476 = vmatpush1.bf16.msra.mxu0 0
    %477 = vmatprep.subr.bf16.mxu0 0
    %478 = vmatpush1.bf16.msra.mxu0 0
    %479 = vmatprep.subr.bf16.mxu0 0
    %480 = vmatpush1.bf16.msra.mxu0 0
    %481 = vmatprep.subr.bf16.mxu0 0
    %482 = vmatpush1.bf16.msra.mxu0 0
    %483 = vmatprep.subr.bf16.mxu0 0
    %484 = vmatpush1.bf16.msra.mxu0 0
    %485 = vmatprep.subr.bf16.mxu0 0
    %486 = vmatpush1.bf16.msra.mxu0 0
    %487 = vmatprep.subr.bf16.mxu0 0
    %488 = vmatpush1.bf16.msra.mxu0 0
    %489 = vmatprep.subr.bf16.mxu0 0
    %490 = vmatpush1.bf16.msra.mxu0 0
    %491 = vmatprep.subr.bf16.mxu0 0
    %492 = vmatpush1.bf16.msra.mxu0 0
    %493 = vmatprep.subr.bf16.mxu0 0
    %494 = vmatpush1.bf16.msra.mxu0 0
    %495 = vmatprep.subr.bf16.mxu0 0
    %496 = vmatpush1.bf16.msra.mxu0 0
    %497 = vmatprep.subr.bf16.mxu0 0
    %498 = vmatpush1.bf16.msra.mxu0 0
    %499 = vmatprep.subr.bf16.mxu0 0
    %500 = vmatpush1.bf16.msra.mxu0 0
    %501 = vmatprep.mubr.bf16.mxu0 0
    %502 = vmatmul.mubr.bf16.gmra.mrb[0].mxu0 %v467
    %v503 = vpop.f32.mrb[0].mxu0
    %v504 = vadd.f32 0.0, %v503
    %v505 = vpop.f32.mrb[0].mxu0
    %v506 = vpop.f32.mrb[0].mxu0
    %v507 = vpop.f32.mrb[0].mxu0
    %508 = vdwg.mxu0
    %vm509 = vcmask 253952
    %v510 = vsel %vm509, %v504, 0.0
    %511 = vadd.xlane.f32.xlu0 %v510
    %v512 = vpop.xlane.xlu0 %511
    %v513 = vrot.slane %v512, 4
    %v514 = vadd.f32 %v512, %v513
    %v515 = vrot.slane %v514, 2
    %v516 = vadd.f32 %v514, %v515
    %v517 = vrot.slane %v516, 1
    %v518 = vadd.f32 %v516, %v517
    %s519 = vtos %v518
    %s520 = scalar_lea.smem [#allocation2], 0
    %521 = sst [smem:[%s520]] %s519
    // Predicated region
    $region10: #{mlp8_sum.1} parent=1 // pred_check
      _
    $region11: #{mlp8_sum.1} parent=1 // pred_check_branch
      %523 = sbr.rel (0) target = $region13
    $region12: #{mlp8_sum.1} parent=1 // pred_region
      %s525 = ssub.s32 16, 16
      %526 = vsyncadd [#allocation3], %s525
      %529 = dma.smem_to_hbm [#allocation2], 16, %s2, [#allocation3]
    $region13: #{mlp8_sum.1} parent=1 // pred_fallthru
      _
    // Predicated region
    $region14: #{mlp8_sum.1} parent=1 // pred_check
      _
    $region15: #{mlp8_sum.1} parent=1 // pred_check_branch
      %531 = sbr.rel (0) target = $region17
    $region16: #{mlp8_sum.1} parent=1 // pred_region
      %532 = dma.done [#allocation3], 16
    $region17: #{mlp8_sum.1} parent=1 // pred_fallthru
      _
    %533 = sfence
    %534 = vsyncpa [#allocation3], 1

</llo_original>
